<compile_context>
chip_gen: v7x
topology: tpu7x:2x2x1
jax: 0.10.0
libtpu: 0.0.40
codegen_flags: <defaults>
</compile_context>

<pallas_src>
import jax
import jax.numpy as jnp
from jax import lax
from jax.experimental import pallas as pl
from jax.experimental.pallas import tpu as pltpu


def _fm_kernel(xu_ref, xc_ref, r1u_ref, r1c_ref, r2u_ref, r2c_ref, b_ref, o_ref):
    # xu: (tb, nu), xc: (tb, nc)
    # r1u/r1c: (n*, k+1) = [V* | W*],  r2u/r2c: (n*, k+1) = [V*^2 | 0]
    # b: (1,) in SMEM, o: (1, tb) lane-dense output block.
    k = r1u_ref.shape[1] - 1

    xu = xu_ref[...].astype(jnp.float32)
    xc = xc_ref[...].astype(jnp.float32)

    # f1 = [x @ V | x @ W]   (tb, k+1)
    f1 = (jnp.dot(xu, r1u_ref[...], preferred_element_type=jnp.float32)
          + jnp.dot(xc, r1c_ref[...], preferred_element_type=jnp.float32))
    # f2 = [x^2 @ V^2 | 0]   (tb, k+1)
    f2 = (jnp.dot(xu * xu, r2u_ref[...], preferred_element_type=jnp.float32)
          + jnp.dot(xc * xc, r2c_ref[...], preferred_element_type=jnp.float32))

    # Per-column epilogue: quadratic columns (j < k) -> 0.5*((xV)^2 - x^2V^2),
    # linear column (j == k) -> x@W.
    col = lax.broadcasted_iota(jnp.int32, (1, k + 1), 1)
    g = jnp.where(col < k, 0.5 * (f1 * f1 - f2), f1)               # (tb, k+1)

    # Reduce over the k+1 columns AND land the result lane-major in one NT
    # matmul: (1, k+1) . (tb, k+1)^T -> (1, tb).  Avoids a (tb,1)->(1,tb)
    # relayout and masked 1-lane stores.
    ones_row = jnp.ones((1, k + 1), jnp.float32)
    row = lax.dot_general(ones_row, g, (((1,), (1,)), ((), ())),
                          preferred_element_type=jnp.float32)      # (1, tb)

    o_ref[...] = (row + b_ref[0]).astype(o_ref.dtype)


def _round_up(x, m):
    return ((x + m - 1) // m) * m


def fm_forward(user_features, city_features, w, b, v, *, block_batch=2048):
    """FMModel.forward: FM layer over concatenated [user | city] features."""
    B, nu = user_features.shape
    Bc, nc = city_features.shape
    assert B == Bc
    n = nu + nc
    k = v.shape[1]
    assert w.shape == (n, 1) and v.shape == (n, k)

    # Pre-split, pre-squared parameter blocks (param-sized work, done once).
    vf = v.astype(jnp.float32)
    wf = w.astype(jnp.float32)
    vu, vc = vf[:nu], vf[nu:]
    wu, wc = wf[:nu], wf[nu:]
    r1u = jnp.concatenate([vu, wu], axis=1)                         # (nu, k+1)
    r1c = jnp.concatenate([vc, wc], axis=1)                         # (nc, k+1)
    r2u = jnp.concatenate([vu * vu, jnp.zeros((nu, 1), jnp.float32)], axis=1)
    r2c = jnp.concatenate([vc * vc, jnp.zeros((nc, 1), jnp.float32)], axis=1)
    b_s = jnp.reshape(b, (1,)).astype(jnp.float32)                  # SMEM scalar

    # Batch tile: as large as possible (fewer grid steps), but at least 2
    # steps whenever B allows so v7x can shard the batch axis over both TCs.
    tb = min(int(block_batch), _round_up(pl.cdiv(B, 2), 8))
    tb = max(tb, 8)
    num_blocks = pl.cdiv(B, tb)

    # Padded, double-buffered per-tile VMEM:
    #   xu/xc blocks pad lanes to 128; (1,tb) output pads sublanes to 8.
    vmem_est = 2 * tb * 4 * (128 + 128 + 8) + (2 << 20)
    cp_kwargs = dict(dimension_semantics=("parallel",))
    if vmem_est > 12 * 1024 * 1024:  # only needed for very large tiles (v5e 16 MiB default)
        cp_kwargs["vmem_limit_bytes"] = int(min(2 * vmem_est, 100 * 1024 * 1024))

    cost = pl.CostEstimate(
        flops=int(2 * B * n * 2 * (k + 1) + 2 * B * (k + 1) + 8 * B * (n + k)),
        transcendentals=0,
        bytes_accessed=int(4 * (B * n + 2 * n * (k + 1) + 1 + B)),
    )

    out = pl.pallas_call(
        _fm_kernel,
        out_shape=jax.ShapeDtypeStruct((num_blocks, tb), jnp.float32),
        grid=(num_blocks,),
        in_specs=[
            pl.BlockSpec((tb, nu), lambda i: (i, 0)),               # user feats
            pl.BlockSpec((tb, nc), lambda i: (i, 0)),               # city feats
            pl.BlockSpec((nu, k + 1), lambda i: (0, 0)),            # [Vu | Wu]   (resident)
            pl.BlockSpec((nc, k + 1), lambda i: (0, 0)),            # [Vc | Wc]   (resident)
            pl.BlockSpec((nu, k + 1), lambda i: (0, 0)),            # [Vu^2 | 0]  (resident)
            pl.BlockSpec((nc, k + 1), lambda i: (0, 0)),            # [Vc^2 | 0]  (resident)
            pl.BlockSpec(memory_space=pltpu.MemorySpace.SMEM),      # bias scalar
        ],
        out_specs=pl.BlockSpec((1, tb), lambda i: (i, 0)),          # lane-dense rows
        compiler_params=pltpu.CompilerParams(**cp_kwargs),
        cost_estimate=cost,
    )(user_features, city_features, r1u, r1c, r2u, r2c, b_s)

    # (num_blocks, tb) lane-dense -> (B, 1); drop the padded tail rows.
    return out.reshape(-1)[:B].reshape(B, 1)


def fm_reference(user_features, city_features, w, b, v):
    """Pure-JAX reference matching the PyTorch module."""
    x = jnp.concatenate([user_features, city_features], axis=1)
    linear = x @ w + b[0]
    inter = 0.5 * jnp.sum((x @ v) ** 2 - (x ** 2) @ (v ** 2), axis=1, keepdims=True)
    return linear + inter


if __name__ == "__main__":
    # Dimensions implied by the module: 35 user features, 19 city features.
    USER_DIM = 35
    CITY_DIM = 19
    K = 8
    BATCH = 8
    N = USER_DIM + CITY_DIM

    key = jax.random.PRNGKey(0)
    k_user, k_city, k_w, k_b, k_v = jax.random.split(key, 5)

    user_features = jax.random.normal(k_user, (BATCH, USER_DIM), dtype=jnp.float32)
    city_features = jax.random.normal(k_city, (BATCH, CITY_DIM), dtype=jnp.float32)

    # Deterministic synthetic parameters (not a checkpoint load).
    # nn.Linear(n, 1): weight (1, n) stored transposed as (n, 1); bias (1,).
    w = jax.random.normal(k_w, (N, 1), dtype=jnp.float32) * (1.0 / jnp.sqrt(N))
    b = jax.random.normal(k_b, (1,), dtype=jnp.float32) * 0.01
    # self.V = nn.Parameter(torch.randn(n, k))
    v = jax.random.normal(k_v, (N, K), dtype=jnp.float32)

    out = fm_forward(user_features, city_features, w, b, v)
    out = jax.block_until_ready(out)

    ref = fm_reference(user_features, city_features, w, b, v)
    assert out.shape == (BATCH, 1), out.shape
    assert jnp.allclose(out, ref, rtol=1e-4, atol=1e-4), (out, ref)

    print("KERNEL_OK")
</pallas_src>

<mosaic_0001>
module attributes {stable_mosaic.version = 11 : i64} {
  func.func @_fm_kernel(%arg0: i32, %arg1: memref<8x35xf32, #tpu.memory_space<vmem>>, %arg2: memref<8x19xf32, #tpu.memory_space<vmem>>, %arg3: memref<35x9xf32, #tpu.memory_space<vmem>>, %arg4: memref<19x9xf32, #tpu.memory_space<vmem>>, %arg5: memref<35x9xf32, #tpu.memory_space<vmem>>, %arg6: memref<19x9xf32, #tpu.memory_space<vmem>>, %arg7: memref<1xf32, #tpu.memory_space<smem>>, %arg8: memref<1x8xf32, #tpu.memory_space<vmem>>) attributes {dimension_semantics = [#tpu.dimension_semantics<parallel>], iteration_bounds = array<i64: 1>, scalar_prefetch = 0 : i64, scratch_operands = 0 : i64, tpu.core_type = #tpu.core_type<tc>, window_params = [{transform_indices = @transform_0, window_bounds = array<i64: 8, 35>}, {transform_indices = @transform_1, window_bounds = array<i64: 8, 19>}, {pipeline_mode = #tpu.pipeline_mode<synchronous>, transform_indices = @transform_2, window_bounds = array<i64: 35, 9>}, {pipeline_mode = #tpu.pipeline_mode<synchronous>, transform_indices = @transform_3, window_bounds = array<i64: 19, 9>}, {pipeline_mode = #tpu.pipeline_mode<synchronous>, transform_indices = @transform_4, window_bounds = array<i64: 35, 9>}, {pipeline_mode = #tpu.pipeline_mode<synchronous>, transform_indices = @transform_5, window_bounds = array<i64: 19, 9>}, {transform_indices = @transform_6, window_bounds = array<i64: 1>}, {transform_indices = @transform_7, window_bounds = array<i64: 1, 8>}]} {
    %c0 = arith.constant 0 : index
    %c0_0 = arith.constant 0 : index
    %0 = vector.load %arg1[%c0, %c0_0] : memref<8x35xf32, #tpu.memory_space<vmem>>, vector<8x35xf32>
    %c0_1 = arith.constant 0 : index
    %c0_2 = arith.constant 0 : index
    %1 = vector.load %arg2[%c0_1, %c0_2] : memref<8x19xf32, #tpu.memory_space<vmem>>, vector<8x19xf32>
    %c0_3 = arith.constant 0 : index
    %c0_4 = arith.constant 0 : index
    %2 = vector.load %arg3[%c0_3, %c0_4] : memref<35x9xf32, #tpu.memory_space<vmem>>, vector<35x9xf32>
    %cst = arith.constant dense<0.000000e+00> : vector<8x9xf32>
    %3 = tpu.matmul %0, %2, %cst {dimension_numbers = #tpu.dot_dimension_numbers<[1], [0], [0], [1], [0, 0, 1, 1], [], []>} : vector<8x35xf32>, vector<35x9xf32>, vector<8x9xf32> -> vector<8x9xf32>
    %c0_5 = arith.constant 0 : index
    %c0_6 = arith.constant 0 : index
    %4 = vector.load %arg4[%c0_5, %c0_6] : memref<19x9xf32, #tpu.memory_space<vmem>>, vector<19x9xf32>
    %cst_7 = arith.constant dense<0.000000e+00> : vector<8x9xf32>
    %5 = tpu.matmul %1, %4, %cst_7 {dimension_numbers = #tpu.dot_dimension_numbers<[1], [0], [0], [1], [0, 0, 1, 1], [], []>} : vector<8x19xf32>, vector<19x9xf32>, vector<8x9xf32> -> vector<8x9xf32>
    %6 = arith.addf %3, %5 : vector<8x9xf32>
    %7 = arith.mulf %0, %0 : vector<8x35xf32>
    %c0_8 = arith.constant 0 : index
    %c0_9 = arith.constant 0 : index
    %8 = vector.load %arg5[%c0_8, %c0_9] : memref<35x9xf32, #tpu.memory_space<vmem>>, vector<35x9xf32>
    %cst_10 = arith.constant dense<0.000000e+00> : vector<8x9xf32>
    %9 = tpu.matmul %7, %8, %cst_10 {dimension_numbers = #tpu.dot_dimension_numbers<[1], [0], [0], [1], [0, 0, 1, 1], [], []>} : vector<8x35xf32>, vector<35x9xf32>, vector<8x9xf32> -> vector<8x9xf32>
    %10 = arith.mulf %1, %1 : vector<8x19xf32>
    %c0_11 = arith.constant 0 : index
    %c0_12 = arith.constant 0 : index
    %11 = vector.load %arg6[%c0_11, %c0_12] : memref<19x9xf32, #tpu.memory_space<vmem>>, vector<19x9xf32>
    %cst_13 = arith.constant dense<0.000000e+00> : vector<8x9xf32>
    %12 = tpu.matmul %10, %11, %cst_13 {dimension_numbers = #tpu.dot_dimension_numbers<[1], [0], [0], [1], [0, 0, 1, 1], [], []>} : vector<8x19xf32>, vector<19x9xf32>, vector<8x9xf32> -> vector<8x9xf32>
    %13 = arith.addf %9, %12 : vector<8x9xf32>
    %14 = tpu.iota {dimensions = array<i32: 1>} : vector<1x9xi32>
    %c8_i32 = arith.constant 8 : i32
    %15 = vector.broadcast %c8_i32 : i32 to vector<1x9xi32>
    %16 = arith.cmpi slt, %14, %15 : vector<1x9xi32>
    %17 = arith.mulf %6, %6 : vector<8x9xf32>
    %18 = arith.subf %17, %13 : vector<8x9xf32>
    %cst_14 = arith.constant 5.000000e-01 : f32
    %19 = vector.broadcast %cst_14 : f32 to vector<8x9xf32>
    %20 = arith.mulf %19, %18 : vector<8x9xf32>
    %21 = vector.shape_cast %16 : vector<1x9xi1> to vector<1x9xi1>
    %22 = vector.broadcast %21 : vector<1x9xi1> to vector<8x9xi1>
    %23 = arith.select %22, %20, %6 : vector<8x9xi1>, vector<8x9xf32>
    %cst_15 = arith.constant 1.000000e+00 : f32
    %24 = vector.broadcast %cst_15 : f32 to vector<1x9xf32>
    %cst_16 = arith.constant dense<0.000000e+00> : vector<1x8xf32>
    %25 = tpu.matmul %24, %23, %cst_16 {dimension_numbers = #tpu.dot_dimension_numbers<[1], [1], [0], [0], [0, 0, 1, 0], [], []>} : vector<1x9xf32>, vector<8x9xf32>, vector<1x8xf32> -> vector<1x8xf32>
    %c0_17 = arith.constant 0 : index
    %26 = memref.load %arg7[%c0_17] : memref<1xf32, #tpu.memory_space<smem>>
    %27 = vector.broadcast %26 : f32 to vector<1x8xf32>
    %28 = arith.addf %25, %27 : vector<1x8xf32>
    %c0_18 = arith.constant 0 : index
    %c0_19 = arith.constant 0 : index
    %29 = vector.load %arg8[%c0_18, %c0_19] : memref<1x8xf32, #tpu.memory_space<vmem>>, vector<1x8xf32>
    tpu.vector_store %arg8[%c0_18, %c0_19], %28 {strides = array<i32>} : memref<1x8xf32, #tpu.memory_space<vmem>>, vector<1x8xf32>,
    return
  }
  func.func @transform_0(%arg0: i32) -> (i32, i32) {
    %c0_i32 = arith.constant 0 : i32
    %c0_i32_0 = arith.constant 0 : i32
    return %arg0, %c0_i32 : i32, i32
  }
  func.func @transform_1(%arg0: i32) -> (i32, i32) {
    %c0_i32 = arith.constant 0 : i32
    %c0_i32_0 = arith.constant 0 : i32
    return %arg0, %c0_i32 : i32, i32
  }
  func.func @transform_2(%arg0: i32) -> (i32, i32) {
    %c0_i32 = arith.constant 0 : i32
    %c0_i32_0 = arith.constant 0 : i32
    %c0_i32_1 = arith.constant 0 : i32
    return %c0_i32, %c0_i32_0 : i32, i32
  }
  func.func @transform_3(%arg0: i32) -> (i32, i32) {
    %c0_i32 = arith.constant 0 : i32
    %c0_i32_0 = arith.constant 0 : i32
    %c0_i32_1 = arith.constant 0 : i32
    return %c0_i32, %c0_i32_0 : i32, i32
  }
  func.func @transform_4(%arg0: i32) -> (i32, i32) {
    %c0_i32 = arith.constant 0 : i32
    %c0_i32_0 = arith.constant 0 : i32
    %c0_i32_1 = arith.constant 0 : i32
    return %c0_i32, %c0_i32_0 : i32, i32
  }
  func.func @transform_5(%arg0: i32) -> (i32, i32) {
    %c0_i32 = arith.constant 0 : i32
    %c0_i32_0 = arith.constant 0 : i32
    %c0_i32_1 = arith.constant 0 : i32
    return %c0_i32, %c0_i32_0 : i32, i32
  }
  func.func @transform_6(%arg0: i32) -> i32 {
    %c0_i32 = arith.constant 0 : i32
    %c0_i32_0 = arith.constant 0 : i32
    return %c0_i32 : i32
  }
  func.func @transform_7(%arg0: i32) -> (i32, i32) {
    %c0_i32 = arith.constant 0 : i32
    %c0_i32_0 = arith.constant 0 : i32
    return %arg0, %c0_i32 : i32, i32
  }
}

</mosaic_0001>

<llo_original>
// kernel: tpu_custom_call.1
$region0: #{tpu_custom_call.1}
  #allocation0 [shape = 'u32[]', space=smem, size = 0x4, offset = 0x4, fixed_abs, tag = 'smem constant byte address 0x4 - core index']
  #allocation1 [shape = 'u32[144,128]{1,0:T(1,128)}', space=vmem, size = 0x12000, scoped, tag = 'internal scratch']
  #allocation2 [shape = 'f32[1]{0:T(128)S(6)}', space=smem, size = 0x200, scoped, tag = 'scoped memory for tpu_custom_call.1']
  %s0 = inlined_call_operand.vmem [shape: f32[8,35], index: 0, kind: input, shape index: {}]
  %s1 = inlined_call_operand.vmem [shape: f32[8,19], index: 1, kind: input, shape index: {}]
  %s2 = inlined_call_operand.vmem [shape: f32[35,9], index: 2, kind: input, shape index: {}]
  %s3 = inlined_call_operand.vmem [shape: f32[19,9], index: 3, kind: input, shape index: {}]
  %s4 = inlined_call_operand.vmem [shape: f32[35,9], index: 4, kind: input, shape index: {}]
  %s5 = inlined_call_operand.vmem [shape: f32[19,9], index: 5, kind: input, shape index: {}]
  %s6 = inlined_call_operand.<no memory space> [shape: f32[1], index: 6, kind: input, shape index: {}]
  %s7 = inlined_call_operand.hbm [shape: f32[1,8], index: 7, kind: output, shape index: {}]
  %s8 = sld [smem:[#allocation0]]
  $region38: #{tpu_custom_call.1} parent=0
    _
  %s10 = ssub.s32 1, %s8
  %s11 = scalar_select 0, %s10, %s8
  %12 = sst [smem:[#allocation2]] %s6
  $region1: #{tpu_custom_call.1} parent=0
    #allocation3 [shape = 'u8[512]{0}', space=vmem, size = 0x400, scoped, tag = 'output window, operand 0, single buffered']
    #allocation4 [shape = 's32[1]{0}', space=sflag, size = 0x4, scoped, tag = 'scoped memory for tpu_custom_call.1']
    %13 = vsyncpa [#allocation4], 0
    // Predicated region
    $region2: #{tpu_custom_call.1} parent=1 // pred_check
      _
    $region3: #{tpu_custom_call.1} parent=1 // pred_check_branch
      %15 = sbr.rel (0) target = $region5
    $region4: #{tpu_custom_call.1} parent=1 // pred_region
      _
    $region5: #{tpu_custom_call.1} parent=1 // pred_fallthru
      _
    // Predicated region
    $region6: #{tpu_custom_call.1} parent=1 // pred_check
      _
    $region7: #{tpu_custom_call.1} parent=1 // pred_check_branch
      %17 = sbr.rel (0) target = $region9
    $region8: #{tpu_custom_call.1} parent=1 // pred_region
      _
    $region9: #{tpu_custom_call.1} parent=1 // pred_fallthru
      _
    // Predicated region
    $region10: #{tpu_custom_call.1} parent=1 // pred_check
      _
    $region11: #{tpu_custom_call.1} parent=1 // pred_check_branch
      %19 = sbr.rel (0) target = $region13
    $region12: #{tpu_custom_call.1} parent=1 // pred_region
      _
    $region13: #{tpu_custom_call.1} parent=1 // pred_fallthru
      _
    // Predicated region
    $region14: #{tpu_custom_call.1} parent=1 // pred_check
      _
    $region15: #{tpu_custom_call.1} parent=1 // pred_check_branch
      %21 = sbr.rel (0) target = $region17
    $region16: #{tpu_custom_call.1} parent=1 // pred_region
      _
    $region17: #{tpu_custom_call.1} parent=1 // pred_fallthru
      _
    // Predicated region
    $region18: #{tpu_custom_call.1} parent=1 // pred_check
      _
    $region19: #{tpu_custom_call.1} parent=1 // pred_check_branch
      %23 = sbr.rel (0) target = $region21
    $region20: #{tpu_custom_call.1} parent=1 // pred_region
      _
    $region21: #{tpu_custom_call.1} parent=1 // pred_fallthru
      _
    // Predicated region
    $region22: #{tpu_custom_call.1} parent=1 // pred_check
      _
    $region23: #{tpu_custom_call.1} parent=1 // pred_check_branch
      %25 = sbr.rel (0) target = $region25
    $region24: #{tpu_custom_call.1} parent=1 // pred_region
      _
    $region25: #{tpu_custom_call.1} parent=1 // pred_fallthru
      _
    // Predicated region
    $region26: #{tpu_custom_call.1} parent=1 // pred_check
      _
    $region27: #{tpu_custom_call.1} parent=1 // pred_check_branch
      %27 = sbr.rel (0) target = $region29
    $region28: #{tpu_custom_call.1} parent=1 // pred_region
      _
    $region29: #{tpu_custom_call.1} parent=1 // pred_fallthru
      _
    %v28 = vld [vmem:[%s0] sm:$0xff]
    %v29 = vld [vmem:[%s1] sm:$0xff]
    %v30 = vld [vmem:[%s2] sm:$0xff]
    %v31 = vld [vmem:[%s2 + $0x8] sm:$0xff]
    %v32 = vld [vmem:[%s2 + $0x10] sm:$0xff]
    %v33 = vld [vmem:[%s2 + $0x18] sm:$0xff]
    %v34 = vld [vmem:[%s2 + $0x20] sm:$0x7]
    %v35 = vld [vmem:[%s3] sm:$0xff]
    %v36 = vld [vmem:[%s3 + $0x8] sm:$0xff]
    %v37 = vld [vmem:[%s3 + $0x10] sm:$0x7]
    %vm38 = vcmask 154624
    %v40 = vsel %vm38, %v29, 0
    %vm42 = vcmask 1042432
    %v44 = vsel %vm42, %v37, 0
    %46 = vmatprep.subr.mxu0 0.0
    %47 = vmatpush1.msra.mxu0 %v35
    %48 = vmatprep.subr.mxu0 0.0
    %49 = vmatpush1.msra.mxu0 %v36
    %50 = vmatprep.subr.mxu0 0.0
    %51 = vmatpush1.msra.mxu0 %v44
    %52 = vmatprep.subr.mxu0 0.0
    %53 = vmatpush1.msra.mxu0 0.0
    %54 = vmatprep.subr.mxu0 0.0
    %55 = vmatpush1.msra.mxu0 0.0
    %56 = vmatprep.subr.mxu0 0.0
    %57 = vmatpush1.msra.mxu0 0.0
    %58 = vmatprep.subr.mxu0 0.0
    %59 = vmatpush1.msra.mxu0 0.0
    %60 = vmatprep.subr.mxu0 0.0
    %61 = vmatpush1.msra.mxu0 0.0
    %62 = vmatprep.subr.mxu0 0.0
    %63 = vmatpush1.msra.mxu0 0.0
    %64 = vmatprep.subr.mxu0 0.0
    %65 = vmatpush1.msra.mxu0 0.0
    %66 = vmatprep.subr.mxu0 0.0
    %67 = vmatpush1.msra.mxu0 0.0
    %68 = vmatprep.subr.mxu0 0.0
    %69 = vmatpush1.msra.mxu0 0.0
    %70 = vmatprep.subr.mxu0 0.0
    %71 = vmatpush1.msra.mxu0 0.0
    %72 = vmatprep.subr.mxu0 0.0
    %73 = vmatpush1.msra.mxu0 0.0
    %74 = vmatprep.subr.mxu0 0.0
    %75 = vmatpush1.msra.mxu0 0.0
    %76 = vmatprep.subr.mxu0 0.0
    %77 = vmatpush1.msra.mxu0 0.0
    %78 = vmatprep.subr.mxu0 0.0
    %79 = vmatpush1.msra.mxu0 0.0
    %80 = vmatprep.subr.mxu0 0.0
    %81 = vmatpush1.msra.mxu0 0.0
    %82 = vmatprep.subr.mxu0 0.0
    %83 = vmatpush1.msra.mxu0 0.0
    %84 = vmatprep.subr.mxu0 0.0
    %85 = vmatpush1.msra.mxu0 0.0
    %86 = vmatprep.subr.mxu0 0.0
    %87 = vmatpush1.msra.mxu0 0.0
    %88 = vmatprep.subr.mxu0 0.0
    %89 = vmatpush1.msra.mxu0 0.0
    %90 = vmatprep.subr.mxu0 0.0
    %91 = vmatpush1.msra.mxu0 0.0
    %92 = vmatprep.subr.mxu0 0.0
    %93 = vmatpush1.msra.mxu0 0.0
    %94 = vmatprep.subr.mxu0 0.0
    %95 = vmatpush1.msra.mxu0 0.0
    %96 = vmatprep.subr.mxu0 0.0
    %97 = vmatpush1.msra.mxu0 0.0
    %98 = vmatprep.subr.mxu0 0.0
    %99 = vmatpush1.msra.mxu0 0.0
    %100 = vmatprep.subr.mxu0 0.0
    %101 = vmatpush1.msra.mxu0 0.0
    %102 = vmatprep.subr.mxu0 0.0
    %103 = vmatpush1.msra.mxu0 0.0
    %104 = vmatprep.subr.mxu0 0.0
    %105 = vmatpush1.msra.mxu0 0.0
    %106 = vmatprep.subr.mxu0 0.0
    %107 = vmatpush1.msra.mxu0 0.0
    %108 = vmatprep.subr.mxu0 0.0
    %109 = vmatpush1.msra.mxu0 0.0
    %110 = vmatprep.mubr.f32.mxu0 0.0
    %111 = vmatmul.mubr.f32.gmra.mrb[0].mxu0 %v40
    %v112 = vpop.f32.mrb[0].mxu0
    %v113 = vadd.f32 0.0, %v112
    %v114 = vpop.f32.mrb[0].mxu0
    %115 = vdwg.mxu0
    %vm116 = vcmask 285696
    %v118 = vsel %vm116, %v28, 0
    %v121 = vsel %vm42, %v34, 0
    %123 = vmatprep.subr.mxu0 0.0
    %124 = vmatpush1.msra.mxu0 %v30
    %125 = vmatprep.subr.mxu0 0.0
    %126 = vmatpush1.msra.mxu0 %v31
    %127 = vmatprep.subr.mxu0 0.0
    %128 = vmatpush1.msra.mxu0 %v32
    %129 = vmatprep.subr.mxu0 0.0
    %130 = vmatpush1.msra.mxu0 %v33
    %131 = vmatprep.subr.mxu0 0.0
    %132 = vmatpush1.msra.mxu0 %v121
    %133 = vmatprep.subr.mxu0 0.0
    %134 = vmatpush1.msra.mxu0 0.0
    %135 = vmatprep.subr.mxu0 0.0
    %136 = vmatpush1.msra.mxu0 0.0
    %137 = vmatprep.subr.mxu0 0.0
    %138 = vmatpush1.msra.mxu0 0.0
    %139 = vmatprep.subr.mxu0 0.0
    %140 = vmatpush1.msra.mxu0 0.0
    %141 = vmatprep.subr.mxu0 0.0
    %142 = vmatpush1.msra.mxu0 0.0
    %143 = vmatprep.subr.mxu0 0.0
    %144 = vmatpush1.msra.mxu0 0.0
    %145 = vmatprep.subr.mxu0 0.0
    %146 = vmatpush1.msra.mxu0 0.0
    %147 = vmatprep.subr.mxu0 0.0
    %148 = vmatpush1.msra.mxu0 0.0
    %149 = vmatprep.subr.mxu0 0.0
    %150 = vmatpush1.msra.mxu0 0.0
    %151 = vmatprep.subr.mxu0 0.0
    %152 = vmatpush1.msra.mxu0 0.0
    %153 = vmatprep.subr.mxu0 0.0
    %154 = vmatpush1.msra.mxu0 0.0
    %155 = vmatprep.subr.mxu0 0.0
    %156 = vmatpush1.msra.mxu0 0.0
    %157 = vmatprep.subr.mxu0 0.0
    %158 = vmatpush1.msra.mxu0 0.0
    %159 = vmatprep.subr.mxu0 0.0
    %160 = vmatpush1.msra.mxu0 0.0
    %161 = vmatprep.subr.mxu0 0.0
    %162 = vmatpush1.msra.mxu0 0.0
    %163 = vmatprep.subr.mxu0 0.0
    %164 = vmatpush1.msra.mxu0 0.0
    %165 = vmatprep.subr.mxu0 0.0
    %166 = vmatpush1.msra.mxu0 0.0
    %167 = vmatprep.subr.mxu0 0.0
    %168 = vmatpush1.msra.mxu0 0.0
    %169 = vmatprep.subr.mxu0 0.0
    %170 = vmatpush1.msra.mxu0 0.0
    %171 = vmatprep.subr.mxu0 0.0
    %172 = vmatpush1.msra.mxu0 0.0
    %173 = vmatprep.subr.mxu0 0.0
    %174 = vmatpush1.msra.mxu0 0.0
    %175 = vmatprep.subr.mxu0 0.0
    %176 = vmatpush1.msra.mxu0 0.0
    %177 = vmatprep.subr.mxu0 0.0
    %178 = vmatpush1.msra.mxu0 0.0
    %179 = vmatprep.subr.mxu0 0.0
    %180 = vmatpush1.msra.mxu0 0.0
    %181 = vmatprep.subr.mxu0 0.0
    %182 = vmatpush1.msra.mxu0 0.0
    %183 = vmatprep.subr.mxu0 0.0
    %184 = vmatpush1.msra.mxu0 0.0
    %185 = vmatprep.subr.mxu0 0.0
    %186 = vmatpush1.msra.mxu0 0.0
    %187 = vmatprep.mubr.f32.mxu0 0.0
    %188 = vmatmul.mubr.f32.gmra.mrb[0].mxu0 %v118
    %v189 = vpop.f32.mrb[0].mxu0
    %v190 = vadd.f32 %v113, %v189
    %v191 = vpop.f32.mrb[0].mxu0
    %192 = vdwg.mxu0
    %v193 = vmul.f32 %v28, %v28
    %v194 = vld [vmem:[%s4] sm:$0xff]
    %v195 = vld [vmem:[%s4 + $0x8] sm:$0xff]
    %v196 = vld [vmem:[%s4 + $0x10] sm:$0xff]
    %v197 = vld [vmem:[%s4 + $0x18] sm:$0xff]
    %v198 = vld [vmem:[%s4 + $0x20] sm:$0x7]
    %v199 = vmul.f32 %v29, %v29
    %v200 = vld [vmem:[%s5] sm:$0xff]
    %v201 = vld [vmem:[%s5 + $0x8] sm:$0xff]
    %v202 = vld [vmem:[%s5 + $0x10] sm:$0x7]
    %v204 = vsel %vm38, %v199, 0
    %v207 = vsel %vm42, %v202, 0
    %209 = vmatprep.subr.mxu0 0.0
    %210 = vmatpush1.msra.mxu0 %v200
    %211 = vmatprep.subr.mxu0 0.0
    %212 = vmatpush1.msra.mxu0 %v201
    %213 = vmatprep.subr.mxu0 0.0
    %214 = vmatpush1.msra.mxu0 %v207
    %215 = vmatprep.subr.mxu0 0.0
    %216 = vmatpush1.msra.mxu0 0.0
    %217 = vmatprep.subr.mxu0 0.0
    %218 = vmatpush1.msra.mxu0 0.0
    %219 = vmatprep.subr.mxu0 0.0
    %220 = vmatpush1.msra.mxu0 0.0
    %221 = vmatprep.subr.mxu0 0.0
    %222 = vmatpush1.msra.mxu0 0.0
    %223 = vmatprep.subr.mxu0 0.0
    %224 = vmatpush1.msra.mxu0 0.0
    %225 = vmatprep.subr.mxu0 0.0
    %226 = vmatpush1.msra.mxu0 0.0
    %227 = vmatprep.subr.mxu0 0.0
    %228 = vmatpush1.msra.mxu0 0.0
    %229 = vmatprep.subr.mxu0 0.0
    %230 = vmatpush1.msra.mxu0 0.0
    %231 = vmatprep.subr.mxu0 0.0
    %232 = vmatpush1.msra.mxu0 0.0
    %233 = vmatprep.subr.mxu0 0.0
    %234 = vmatpush1.msra.mxu0 0.0
    %235 = vmatprep.subr.mxu0 0.0
    %236 = vmatpush1.msra.mxu0 0.0
    %237 = vmatprep.subr.mxu0 0.0
    %238 = vmatpush1.msra.mxu0 0.0
    %239 = vmatprep.subr.mxu0 0.0
    %240 = vmatpush1.msra.mxu0 0.0
    %241 = vmatprep.subr.mxu0 0.0
    %242 = vmatpush1.msra.mxu0 0.0
    %243 = vmatprep.subr.mxu0 0.0
    %244 = vmatpush1.msra.mxu0 0.0
    %245 = vmatprep.subr.mxu0 0.0
    %246 = vmatpush1.msra.mxu0 0.0
    %247 = vmatprep.subr.mxu0 0.0
    %248 = vmatpush1.msra.mxu0 0.0
    %249 = vmatprep.subr.mxu0 0.0
    %250 = vmatpush1.msra.mxu0 0.0
    %251 = vmatprep.subr.mxu0 0.0
    %252 = vmatpush1.msra.mxu0 0.0
    %253 = vmatprep.subr.mxu0 0.0
    %254 = vmatpush1.msra.mxu0 0.0
    %255 = vmatprep.subr.mxu0 0.0
    %256 = vmatpush1.msra.mxu0 0.0
    %257 = vmatprep.subr.mxu0 0.0
    %258 = vmatpush1.msra.mxu0 0.0
    %259 = vmatprep.subr.mxu0 0.0
    %260 = vmatpush1.msra.mxu0 0.0
    %261 = vmatprep.subr.mxu0 0.0
    %262 = vmatpush1.msra.mxu0 0.0
    %263 = vmatprep.subr.mxu0 0.0
    %264 = vmatpush1.msra.mxu0 0.0
    %265 = vmatprep.subr.mxu0 0.0
    %266 = vmatpush1.msra.mxu0 0.0
    %267 = vmatprep.subr.mxu0 0.0
    %268 = vmatpush1.msra.mxu0 0.0
    %269 = vmatprep.subr.mxu0 0.0
    %270 = vmatpush1.msra.mxu0 0.0
    %271 = vmatprep.subr.mxu0 0.0
    %272 = vmatpush1.msra.mxu0 0.0
    %273 = vmatprep.mubr.f32.mxu0 0.0
    %274 = vmatmul.mubr.f32.gmra.mrb[0].mxu0 %v204
    %v275 = vpop.f32.mrb[0].mxu0
    %v276 = vadd.f32 0.0, %v275
    %v277 = vpop.f32.mrb[0].mxu0
    %278 = vdwg.mxu0
    %v280 = vsel %vm116, %v193, 0
    %v283 = vsel %vm42, %v198, 0
    %285 = vmatprep.subr.mxu0 0.0
    %286 = vmatpush1.msra.mxu0 %v194
    %287 = vmatprep.subr.mxu0 0.0
    %288 = vmatpush1.msra.mxu0 %v195
    %289 = vmatprep.subr.mxu0 0.0
    %290 = vmatpush1.msra.mxu0 %v196
    %291 = vmatprep.subr.mxu0 0.0
    %292 = vmatpush1.msra.mxu0 %v197
    %293 = vmatprep.subr.mxu0 0.0
    %294 = vmatpush1.msra.mxu0 %v283
    %295 = vmatprep.subr.mxu0 0.0
    %296 = vmatpush1.msra.mxu0 0.0
    %297 = vmatprep.subr.mxu0 0.0
    %298 = vmatpush1.msra.mxu0 0.0
    %299 = vmatprep.subr.mxu0 0.0
    %300 = vmatpush1.msra.mxu0 0.0
    %301 = vmatprep.subr.mxu0 0.0
    %302 = vmatpush1.msra.mxu0 0.0
    %303 = vmatprep.subr.mxu0 0.0
    %304 = vmatpush1.msra.mxu0 0.0
    %305 = vmatprep.subr.mxu0 0.0
    %306 = vmatpush1.msra.mxu0 0.0
    %307 = vmatprep.subr.mxu0 0.0
    %308 = vmatpush1.msra.mxu0 0.0
    %309 = vmatprep.subr.mxu0 0.0
    %310 = vmatpush1.msra.mxu0 0.0
    %311 = vmatprep.subr.mxu0 0.0
    %312 = vmatpush1.msra.mxu0 0.0
    %313 = vmatprep.subr.mxu0 0.0
    %314 = vmatpush1.msra.mxu0 0.0
    %315 = vmatprep.subr.mxu0 0.0
    %316 = vmatpush1.msra.mxu0 0.0
    %317 = vmatprep.subr.mxu0 0.0
    %318 = vmatpush1.msra.mxu0 0.0
    %319 = vmatprep.subr.mxu0 0.0
    %320 = vmatpush1.msra.mxu0 0.0
    %321 = vmatprep.subr.mxu0 0.0
    %322 = vmatpush1.msra.mxu0 0.0
    %323 = vmatprep.subr.mxu0 0.0
    %324 = vmatpush1.msra.mxu0 0.0
    %325 = vmatprep.subr.mxu0 0.0
    %326 = vmatpush1.msra.mxu0 0.0
    %327 = vmatprep.subr.mxu0 0.0
    %328 = vmatpush1.msra.mxu0 0.0
    %329 = vmatprep.subr.mxu0 0.0
    %330 = vmatpush1.msra.mxu0 0.0
    %331 = vmatprep.subr.mxu0 0.0
    %332 = vmatpush1.msra.mxu0 0.0
    %333 = vmatprep.subr.mxu0 0.0
    %334 = vmatpush1.msra.mxu0 0.0
    %335 = vmatprep.subr.mxu0 0.0
    %336 = vmatpush1.msra.mxu0 0.0
    %337 = vmatprep.subr.mxu0 0.0
    %338 = vmatpush1.msra.mxu0 0.0
    %339 = vmatprep.subr.mxu0 0.0
    %340 = vmatpush1.msra.mxu0 0.0
    %341 = vmatprep.subr.mxu0 0.0
    %342 = vmatpush1.msra.mxu0 0.0
    %343 = vmatprep.subr.mxu0 0.0
    %344 = vmatpush1.msra.mxu0 0.0
    %345 = vmatprep.subr.mxu0 0.0
    %346 = vmatpush1.msra.mxu0 0.0
    %347 = vmatprep.subr.mxu0 0.0
    %348 = vmatpush1.msra.mxu0 0.0
    %349 = vmatprep.mubr.f32.mxu0 0.0
    %350 = vmatmul.mubr.f32.gmra.mrb[0].mxu0 %v280
    %v351 = vpop.f32.mrb[0].mxu0
    %v352 = vadd.f32 %v276, %v351
    %v353 = vpop.f32.mrb[0].mxu0
    %354 = vdwg.mxu0
    %v355 = vlaneseq
    %v356 = vand.u32 %v355, 127
    %vm357 = vcmp.lt.s32.totalorder %v356, 8
    %v358 = vmul.f32 %v190, %v190
    %v359 = vsub.f32 %v358, %v352
    %v360 = vmul.f32 %v359, 0.5
    %v361 = vsel %vm357, 1, 0
    %vm362 = vcmp.eq.s32.totalorder %v361, 1
    %v363 = vsel %vm362, %v360, %v190
    %s364 = sld [smem:[#allocation2]]
    %v365 = vstv %s364
    %vm366 = vcmask 72704
    %v368 = vsel %vm366, 1.0, 0
    %v371 = vsel %vm366, %v363, 0
    %373 = vmatprep.subr.mxu0 0.0
    %374 = vmatpush1.xpose.msra.mxu0 %v371
    %375 = vmatprep.subr.mxu0 0.0
    %376 = vmatpush1.xpose.msra.mxu0 0.0
    %377 = vmatprep.subr.mxu0 0.0
    %378 = vmatpush1.xpose.msra.mxu0 0.0
    %379 = vmatprep.subr.mxu0 0.0
    %380 = vmatpush1.xpose.msra.mxu0 0.0
    %381 = vmatprep.subr.mxu0 0.0
    %382 = vmatpush1.xpose.msra.mxu0 0.0
    %383 = vmatprep.subr.mxu0 0.0
    %384 = vmatpush1.xpose.msra.mxu0 0.0
    %385 = vmatprep.subr.mxu0 0.0
    %386 = vmatpush1.xpose.msra.mxu0 0.0
    %387 = vmatprep.subr.mxu0 0.0
    %388 = vmatpush1.xpose.msra.mxu0 0.0
    %389 = vmatprep.subr.mxu0 0.0
    %390 = vmatpush1.xpose.msra.mxu0 0.0
    %391 = vmatprep.subr.mxu0 0.0
    %392 = vmatpush1.xpose.msra.mxu0 0.0
    %393 = vmatprep.subr.mxu0 0.0
    %394 = vmatpush1.xpose.msra.mxu0 0.0
    %395 = vmatprep.subr.mxu0 0.0
    %396 = vmatpush1.xpose.msra.mxu0 0.0
    %397 = vmatprep.subr.mxu0 0.0
    %398 = vmatpush1.xpose.msra.mxu0 0.0
    %399 = vmatprep.subr.mxu0 0.0
    %400 = vmatpush1.xpose.msra.mxu0 0.0
    %401 = vmatprep.subr.mxu0 0.0
    %402 = vmatpush1.xpose.msra.mxu0 0.0
    %403 = vmatprep.subr.mxu0 0.0
    %404 = vmatpush1.xpose.msra.mxu0 0.0
    %405 = vmatprep.subr.mxu0 0.0
    %406 = vmatpush1.xpose.msra.mxu0 0.0
    %407 = vmatprep.subr.mxu0 0.0
    %408 = vmatpush1.xpose.msra.mxu0 0.0
    %409 = vmatprep.subr.mxu0 0.0
    %410 = vmatpush1.xpose.msra.mxu0 0.0
    %411 = vmatprep.subr.mxu0 0.0
    %412 = vmatpush1.xpose.msra.mxu0 0.0
    %413 = vmatprep.subr.mxu0 0.0
    %414 = vmatpush1.xpose.msra.mxu0 0.0
    %415 = vmatprep.subr.mxu0 0.0
    %416 = vmatpush1.xpose.msra.mxu0 0.0
    %417 = vmatprep.subr.mxu0 0.0
    %418 = vmatpush1.xpose.msra.mxu0 0.0
    %419 = vmatprep.subr.mxu0 0.0
    %420 = vmatpush1.xpose.msra.mxu0 0.0
    %421 = vmatprep.subr.mxu0 0.0
    %422 = vmatpush1.xpose.msra.mxu0 0.0
    %423 = vmatprep.subr.mxu0 0.0
    %424 = vmatpush1.xpose.msra.mxu0 0.0
    %425 = vmatprep.subr.mxu0 0.0
    %426 = vmatpush1.xpose.msra.mxu0 0.0
    %427 = vmatprep.subr.mxu0 0.0
    %428 = vmatpush1.xpose.msra.mxu0 0.0
    %429 = vmatprep.subr.mxu0 0.0
    %430 = vmatpush1.xpose.msra.mxu0 0.0
    %431 = vmatprep.subr.mxu0 0.0
    %432 = vmatpush1.xpose.msra.mxu0 0.0
    %433 = vmatprep.subr.mxu0 0.0
    %434 = vmatpush1.xpose.msra.mxu0 0.0
    %435 = vmatprep.subr.mxu0 0.0
    %436 = vmatpush1.xpose.msra.mxu0 0.0
    %437 = vmatprep.mubr.f32.mxu0 0.0
    %438 = vmatmul.mubr.f32.gmra.mrb[0].mxu0 %v368
    %v439 = vpop.f32.mrb[0].mxu0
    %v440 = vadd.f32 %v365, %v439
    %v441 = vpop.f32.mrb[0].mxu0
    %442 = vdwg.mxu0
    %vm443 = vcmask 57344
    %444 = vst.msk [vmem:[#allocation3] sm:$0x1] %vm443, %v440
    // Predicated region
    $region30: #{tpu_custom_call.1} parent=1 // pred_check
      _
    $region31: #{tpu_custom_call.1} parent=1 // pred_check_branch
      %446 = sbr.rel (0) target = $region33
    $region32: #{tpu_custom_call.1} parent=1 // pred_region
      %s448 = ssub.s32 16, 16
      %449 = vsyncadd [#allocation4], %s448
      %s451 = sshll.u32 [#allocation3], 4
      %s452 = int_to_ptr.vmem [resolvable:$true] %s451
      %454 = dma.vmem_to_hbm [thread:$0]  %s452, 16, %s7, [#allocation4]
    $region33: #{tpu_custom_call.1} parent=1 // pred_fallthru
      _
    // Predicated region
    $region34: #{tpu_custom_call.1} parent=1 // pred_check
      _
    $region35: #{tpu_custom_call.1} parent=1 // pred_check_branch
      %456 = sbr.rel (0) target = $region37
    $region36: #{tpu_custom_call.1} parent=1 // pred_region
      %457 = dma.done [#allocation4], 16
    $region37: #{tpu_custom_call.1} parent=1 // pred_fallthru
      _
    %458 = vsyncpa [#allocation4], 1

</llo_original>
